<compile_context>
chip_gen: v5e
topology: v5e:2x2
jax: 0.10.0
libtpu: 0.0.40
codegen_flags: <defaults>
</compile_context>

<pallas_src>
import functools
import math

import jax
import jax.numpy as jnp
from jax.experimental import pallas as pl
from jax.experimental.pallas import tpu as pltpu


def _round_up(x: int, m: int) -> int:
    return ((x + m - 1) // m) * m


def _lcm(a: int, b: int) -> int:
    return a * b // math.gcd(a, b)


def _pick_pack_factor(D: int, C: int) -> int:
    """Smallest P making both P*D (input lanes) and P*C (output lanes) multiples of
    128, capped so the packed block-diagonal weight stays small (<= ~1 MiB f32).
    For the module's shapes (D=32, C=8) this is P=16 -> K=512, N=128."""
    need_d = 128 // math.gcd(D, 128)
    need_c = 128 // math.gcd(C, 128)
    P = _lcm(need_d, need_c)
    while P > 1 and (P * D) * (P * C) * 4 > (1 << 20):
        P //= 2
    return max(P, 1)


def _afr_packed_linear_kernel(x_ref, w_ref, b_ref, out_ref):
    """One batch tile of the packed classifier matmul.

    x_ref:   (tile_bp, K)  packed embeddings (K = P*D), lane-dense
    w_ref:   (K, N)        block-diagonal packed W^T (N = P*C), VMEM-resident
    b_ref:   (1, N)        bias tiled P times, f32
    out_ref: (tile_bp, N)  packed logits; reshapes to (tile_bp*P, C) for free
    """
    acc = jnp.dot(x_ref[...], w_ref[...], preferred_element_type=jnp.float32)
    out_ref[...] = (acc + b_ref[...]).astype(out_ref.dtype)


# Default tiling (in packed rows). 1024 packed rows == 16384 embedding rows:
# ~2.5 MB HBM traffic per step, ~5.5 MiB double-buffered VMEM (safe on all gens).
_MAX_TILE_BP = 1024
# Only split into >= 2 grid steps (so v7x's 2 TensorCores both get work) when each
# step still moves >= ~1.3 MB, keeping the ~0.35 us fixed per-step cost amortized.
_MIN_SPLIT_BP = 512


@functools.partial(jax.jit, static_argnames=("tile_bp",))
def rect_model_afr_forward(embs, weight, bias, *, tile_bp=None):
    """Pallas implementation of RectModelAFR.forward (classifier path).

    Args:
      embs:   (B, D) — classifier embeddings (f32 or bf16; kernel runs in this dtype,
              f32 accumulation either way).
      weight: (C, D) — nn.Linear weight in native PyTorch layout.
      bias:   (C,)   — nn.Linear bias.
      tile_bp: optional packed-row tile override (must be a multiple of 8 if it
               yields more than one grid step). Auto-selected when None.
    Returns:
      (B, C) logits in embs.dtype.
    """
    B, D = embs.shape
    C, Dw = weight.shape
    if D != Dw:
        raise ValueError("embedding dim mismatch")
    out_dtype = embs.dtype

    P = _pick_pack_factor(D, C)
    K, N = P * D, P * C

    # Pad only the <= P-1 tail rows needed for the packing (none when B % P == 0).
    pad = (-B) % P
    if pad:
        embs = jnp.pad(embs, ((0, pad), (0, 0)))
    Bp = (B + pad) // P

    # Free, contiguous reshape: rows stay bit-identical in memory.
    x = embs.reshape(Bp, K)

    # Tiny packed parameters (K x N elements): block-diagonal kron(I_P, W^T) and the
    # bias tiled P times. Negligible cost; fuses into the jitted graph.
    w_pack = jnp.kron(jnp.eye(P, dtype=weight.dtype), weight.T).astype(embs.dtype)
    b_pack = jnp.tile(bias.astype(jnp.float32), P).reshape(1, N)

    # --- batch-tile selection (packed rows) ---------------------------------------
    if tile_bp is None:
        if Bp <= 2 * _MIN_SPLIT_BP:
            tile_bp = Bp                                   # single step: too small to split
        else:
            tile_bp = min(_MAX_TILE_BP, _round_up(pl.cdiv(Bp, 2), 128))
    grid_bp = pl.cdiv(Bp, tile_bp)
    if grid_bp > 1 and tile_bp % 8 != 0:
        raise ValueError("tile_bp must be a multiple of 8 when the grid has >1 step")

    out_packed = pl.pallas_call(
        _afr_packed_linear_kernel,
        out_shape=jax.ShapeDtypeStruct((Bp, N), out_dtype),
        grid_spec=pltpu.PrefetchScalarGridSpec(
            num_scalar_prefetch=0,
            grid=(grid_bp,),
            in_specs=[
                pl.BlockSpec((tile_bp, K), lambda i: (i, 0)),  # streamed embs tile
                pl.BlockSpec((K, N), lambda i: (0, 0)),        # packed weight (resident)
                pl.BlockSpec((1, N), lambda i: (0, 0)),        # packed bias (resident)
            ],
            out_specs=pl.BlockSpec((tile_bp, N), lambda i: (i, 0)),  # lane-dense stores
        ),
        compiler_params=pltpu.CompilerParams(
            dimension_semantics=("parallel",),  # batch steps shard across TCs (v7x)
        ),
    )(x, w_pack, b_pack)

    # Free contiguous reshape back to row-major (B_padded, C); the slice only copies
    # when the tail was actually padded.
    return out_packed.reshape(Bp * P, C)[:B]


# Below a few thousand rows the pallas_call launch plus a single overhead-dominated
# grid step cannot beat XLA's fused dot+add; dispatch to the Pallas path only for
# large batches. (The demo below calls the Pallas path directly to exercise it.)
_PALLAS_MIN_BATCH = 4096


def afr_classifier(embs, weight, bias, **kwargs):
    if embs.shape[0] < _PALLAS_MIN_BATCH:
        return embs @ weight.T + bias
    return rect_model_afr_forward(embs, weight, bias, **kwargs)


if __name__ == "__main__":
    # Small shapes consistent with the module: classi_emb_dim=32, num_classes=8.
    D, C = 32, 8
    key = jax.random.PRNGKey(0)
    k_w, k_b, k1, k2, k3 = jax.random.split(key, 5)

    # Deterministic stand-ins for the cloned ERM classifier weights.
    weight = jax.random.normal(k_w, (C, D), dtype=jnp.float32) * 0.05
    bias = jax.random.normal(k_b, (C,), dtype=jnp.float32) * 0.05

    def ref(e):
        return e @ weight.T + bias

    # Case 1: batch divisible by the x16 packing (single grid step).
    e1 = jax.random.normal(k1, (64, D), dtype=jnp.float32)
    p1 = jax.block_until_ready(rect_model_afr_forward(e1, weight, bias))
    assert p1.shape == (64, C)
    assert jnp.allclose(p1, ref(e1), atol=1e-4, rtol=1e-5)

    # Case 2: ragged batch (exercises the tail-only padding path).
    e2 = jax.random.normal(k2, (13, D), dtype=jnp.float32)
    p2 = jax.block_until_ready(rect_model_afr_forward(e2, weight, bias))
    assert p2.shape == (13, C)
    assert jnp.allclose(p2, ref(e2), atol=1e-4, rtol=1e-5)

    # Case 3: multi-step grid with a ragged final packed block (small explicit tile):
    # B=272 -> Bp=17 packed rows, tile_bp=8 -> grid of 3, last block 1 valid row.
    e3 = jax.random.normal(k3, (272, D), dtype=jnp.float32)
    p3 = jax.block_until_ready(rect_model_afr_forward(e3, weight, bias, tile_bp=8))
    assert p3.shape == (272, C)
    assert jnp.allclose(p3, ref(e3), atol=1e-4, rtol=1e-5)

    print("KERNEL_OK")
</pallas_src>

<mosaic_0001>
module attributes {stable_mosaic.version = 11 : i64} {
  func.func @_afr_packed_linear_kernel(%arg0: i32, %arg1: memref<4x512xf32, #tpu.memory_space<vmem>>, %arg2: memref<512x128xf32, #tpu.memory_space<vmem>>, %arg3: memref<1x128xf32, #tpu.memory_space<vmem>>, %arg4: memref<4x128xf32, #tpu.memory_space<vmem>>) attributes {dimension_semantics = [#tpu.dimension_semantics<parallel>], iteration_bounds = array<i64: 1>, scalar_prefetch = 0 : i64, scratch_operands = 0 : i64, tpu.core_type = #tpu.core_type<tc>, window_params = [{transform_indices = @transform_0, window_bounds = array<i64: 4, 512>}, {pipeline_mode = #tpu.pipeline_mode<synchronous>, transform_indices = @transform_1, window_bounds = array<i64: 512, 128>}, {pipeline_mode = #tpu.pipeline_mode<synchronous>, transform_indices = @transform_2, window_bounds = array<i64: 1, 128>}, {transform_indices = @transform_3, window_bounds = array<i64: 4, 128>}]} {
    %c0 = arith.constant 0 : index
    %c0_0 = arith.constant 0 : index
    %0 = vector.load %arg1[%c0, %c0_0] : memref<4x512xf32, #tpu.memory_space<vmem>>, vector<4x512xf32>
    %c0_1 = arith.constant 0 : index
    %c0_2 = arith.constant 0 : index
    %1 = vector.load %arg2[%c0_1, %c0_2] : memref<512x128xf32, #tpu.memory_space<vmem>>, vector<512x128xf32>
    %cst = arith.constant dense<0.000000e+00> : vector<4x128xf32>
    %2 = tpu.matmul %0, %1, %cst {dimension_numbers = #tpu.dot_dimension_numbers<[1], [0], [0], [1], [0, 0, 1, 1], [], []>} : vector<4x512xf32>, vector<512x128xf32>, vector<4x128xf32> -> vector<4x128xf32>
    %c0_3 = arith.constant 0 : index
    %c0_4 = arith.constant 0 : index
    %3 = vector.load %arg3[%c0_3, %c0_4] : memref<1x128xf32, #tpu.memory_space<vmem>>, vector<1x128xf32>
    %4 = vector.broadcast %3 : vector<1x128xf32> to vector<4x128xf32>
    %5 = arith.addf %2, %4 : vector<4x128xf32>
    %c0_5 = arith.constant 0 : index
    %c0_6 = arith.constant 0 : index
    %6 = vector.load %arg4[%c0_5, %c0_6] : memref<4x128xf32, #tpu.memory_space<vmem>>, vector<4x128xf32>
    tpu.vector_store %arg4[%c0_5, %c0_6], %5 {strides = array<i32>} : memref<4x128xf32, #tpu.memory_space<vmem>>, vector<4x128xf32>,
    return
  }
  func.func @transform_0(%arg0: i32) -> (i32, i32) {
    %c0_i32 = arith.constant 0 : i32
    %c0_i32_0 = arith.constant 0 : i32
    return %arg0, %c0_i32 : i32, i32
  }
  func.func @transform_1(%arg0: i32) -> (i32, i32) {
    %c0_i32 = arith.constant 0 : i32
    %c0_i32_0 = arith.constant 0 : i32
    %c0_i32_1 = arith.constant 0 : i32
    return %c0_i32, %c0_i32_0 : i32, i32
  }
  func.func @transform_2(%arg0: i32) -> (i32, i32) {
    %c0_i32 = arith.constant 0 : i32
    %c0_i32_0 = arith.constant 0 : i32
    %c0_i32_1 = arith.constant 0 : i32
    return %c0_i32, %c0_i32_0 : i32, i32
  }
  func.func @transform_3(%arg0: i32) -> (i32, i32) {
    %c0_i32 = arith.constant 0 : i32
    %c0_i32_0 = arith.constant 0 : i32
    return %arg0, %c0_i32 : i32, i32
  }
}

</mosaic_0001>

<llo_original>
// kernel: tile.8
$region0: #{tile.8}
  #allocation0 [shape = 's32[1]{0}', space=sflag, size = 0x4, scoped, tag = 'scoped memory for tile.8']
  %s0 = inlined_call_operand.vmem [shape: f32[8], index: 0, kind: input, shape index: {}]
  %s1 = inlined_call_operand.vmem [shape: f32[16,8], index: 1, kind: output, shape index: {}]
  // Predicated region
  $region2: #{tile.8} parent=0 // pred_check
    _
  $region3: #{tile.8} parent=0 // pred_check_branch
    %3 = sbr.rel (0) target = $region5
  $region4: #{tile.8} parent=0 // pred_region
    _
  $region5: #{tile.8} parent=0 // pred_fallthru
    _
  %v4 = vld [vmem:[%s0] ss:$0 sm:$0xff]
  %5 = vst [vmem:[%s1] sm:$0xff] %v4
  %s6 = scalar_lea.vmem %s1, 8
  %7 = vst [vmem:[%s6] sm:$0xff] %v4

// kernel: tile.9
$region0: #{tile.9}
  %s0 = inlined_call_operand.vmem [shape: f32[16,8], index: 0, kind: input, shape index: {}]
  %s1 = inlined_call_operand.vmem [shape: f32[1,128], index: 1, kind: output, shape index: {}]
  $region1: #{tile.9} parent=0
    #allocation0 [shape = 'u8[4096]{0}', space=vmem, size = 0x1000, scoped, tag = 'scoped mem for output reshape']
    %v2 = vld [vmem:[%s0] sm:$0x1]
    %vm3 = vcmask 64512
    %4 = vst.msk [vmem:[#allocation0] sm:$0x1] %vm3, %v2
    %s5 = scalar_lea.vmem %s0, 15
    %v6 = vld [vmem:[%s5] sm:$0x1]
    %7 = vrot.lane.b32.xlu0 %v6, 120
    %v8 = vpop.permute.xlu0 %7
    %vm9 = vcmask 1048512
    %10 = vst.msk [vmem:[#allocation0] sm:$0x1] %vm9, %v8
    %s11 = scalar_lea.vmem %s0, 14
    %v12 = vld [vmem:[%s11] sm:$0x1]
    %13 = vrot.lane.b32.xlu0 %v12, 112
    %v14 = vpop.permute.xlu0 %13
    %vm15 = vcmask 982912
    %16 = vst.msk [vmem:[#allocation0] sm:$0x1] %vm15, %v14
    %s17 = scalar_lea.vmem %s0, 13
    %v18 = vld [vmem:[%s17] sm:$0x1]
    %19 = vrot.lane.b32.xlu0 %v18, 104
    %v20 = vpop.permute.xlu0 %19
    %vm21 = vcmask 917312
    %22 = vst.msk [vmem:[#allocation0] sm:$0x1] %vm21, %v20
    %s23 = scalar_lea.vmem %s0, 12
    %v24 = vld [vmem:[%s23] sm:$0x1]
    %25 = vrot.lane.b32.xlu0 %v24, 96
    %v26 = vpop.permute.xlu0 %25
    %vm27 = vcmask 851712
    %28 = vst.msk [vmem:[#allocation0] sm:$0x1] %vm27, %v26
    %s29 = scalar_lea.vmem %s0, 11
    %v30 = vld [vmem:[%s29] sm:$0x1]
    %31 = vrot.lane.b32.xlu0 %v30, 88
    %v32 = vpop.permute.xlu0 %31
    %vm33 = vcmask 786112
    %34 = vst.msk [vmem:[#allocation0] sm:$0x1] %vm33, %v32
    %s35 = scalar_lea.vmem %s0, 10
    %v36 = vld [vmem:[%s35] sm:$0x1]
    %37 = vrot.lane.b32.xlu0 %v36, 80
    %v38 = vpop.permute.xlu0 %37
    %vm39 = vcmask 720512
    %40 = vst.msk [vmem:[#allocation0] sm:$0x1] %vm39, %v38
    %s41 = scalar_lea.vmem %s0, 9
    %v42 = vld [vmem:[%s41] sm:$0x1]
    %43 = vrot.lane.b32.xlu0 %v42, 72
    %v44 = vpop.permute.xlu0 %43
    %vm45 = vcmask 654912
    %46 = vst.msk [vmem:[#allocation0] sm:$0x1] %vm45, %v44
    %s47 = scalar_lea.vmem %s0, 8
    %v48 = vld [vmem:[%s47] sm:$0x1]
    %49 = vrot.lane.b32.xlu0 %v48, 64
    %v50 = vpop.permute.xlu0 %49
    %vm51 = vcmask 589312
    %52 = vst.msk [vmem:[#allocation0] sm:$0x1] %vm51, %v50
    %s53 = scalar_lea.vmem %s0, 7
    %v54 = vld [vmem:[%s53] sm:$0x1]
    %55 = vrot.lane.b32.xlu0 %v54, 56
    %v56 = vpop.permute.xlu0 %55
    %vm57 = vcmask 523712
    %58 = vst.msk [vmem:[#allocation0] sm:$0x1] %vm57, %v56
    %s59 = scalar_lea.vmem %s0, 6
    %v60 = vld [vmem:[%s59] sm:$0x1]
    %61 = vrot.lane.b32.xlu0 %v60, 48
    %v62 = vpop.permute.xlu0 %61
    %vm63 = vcmask 458112
    %64 = vst.msk [vmem:[#allocation0] sm:$0x1] %vm63, %v62
    %s65 = scalar_lea.vmem %s0, 5
    %v66 = vld [vmem:[%s65] sm:$0x1]
    %67 = vrot.lane.b32.xlu0 %v66, 40
    %v68 = vpop.permute.xlu0 %67
    %vm69 = vcmask 392512
    %70 = vst.msk [vmem:[#allocation0] sm:$0x1] %vm69, %v68
    %s71 = scalar_lea.vmem %s0, 4
    %v72 = vld [vmem:[%s71] sm:$0x1]
    %73 = vrot.lane.b32.xlu0 %v72, 32
    %v74 = vpop.permute.xlu0 %73
    %vm75 = vcmask 326912
    %76 = vst.msk [vmem:[#allocation0] sm:$0x1] %vm75, %v74
    %s77 = scalar_lea.vmem %s0, 3
    %v78 = vld [vmem:[%s77] sm:$0x1]
    %79 = vrot.lane.b32.xlu0 %v78, 24
    %v80 = vpop.permute.xlu0 %79
    %vm81 = vcmask 261312
    %82 = vst.msk [vmem:[#allocation0] sm:$0x1] %vm81, %v80
    %s83 = scalar_lea.vmem %s0, 2
    %v84 = vld [vmem:[%s83] sm:$0x1]
    %85 = vrot.lane.b32.xlu0 %v84, 16
    %v86 = vpop.permute.xlu0 %85
    %vm87 = vcmask 195712
    %88 = vst.msk [vmem:[#allocation0] sm:$0x1] %vm87, %v86
    %s89 = scalar_lea.vmem %s0, 1
    %v90 = vld [vmem:[%s89] sm:$0x1]
    %91 = vrot.lane.b32.xlu0 %v90, 8
    %v92 = vpop.permute.xlu0 %91
    %vm93 = vcmask 130112
    %94 = vst.msk [vmem:[#allocation0] sm:$0x1] %vm93, %v92
    %s96 = ssub.s32 2, 1
    %v97 = vld [vmem:[#allocation0] sm:%s96]
    %s99 = ssub.s32 2, 1
    %100 = vst [vmem:[%s1] sm:%s99] %v97

// kernel: rect_model_afr_forward.1
$region0: #{rect_model_afr_forward.1}
  #allocation0 [shape = 'u32[]', space=smem, size = 0x4, offset = 0x4, fixed_abs, tag = 'smem constant byte address 0x4 - core index']
  #allocation1 [shape = 'u32[72,128]{1,0:T(1,128)}', space=vmem, size = 0x9000, scoped, tag = 'internal scratch']
  %s0 = inlined_call_operand.vmem [shape: f32[4,512], index: 0, kind: input, shape index: {}]
  %s1 = inlined_call_operand.vmem [shape: f32[512,128], index: 1, kind: input, shape index: {}]
  %s2 = inlined_call_operand.vmem [shape: f32[1,128], index: 2, kind: input, shape index: {}]
  %s3 = inlined_call_operand.vmem [shape: f32[4,128], index: 3, kind: output, shape index: {}]
  %s4 = sld [smem:[#allocation0]]
  $region22: #{rect_model_afr_forward.1} parent=0
    _
  %s6 = ssub.s32 1, %s4
  %s7 = scalar_select 0, %s6, %s4
  // Predicated region
  $region2: #{rect_model_afr_forward.1} parent=0 // pred_check
    _
  $region3: #{rect_model_afr_forward.1} parent=0 // pred_check_branch
    %9 = sbr.rel (0) target = $region5
  $region4: #{rect_model_afr_forward.1} parent=0 // pred_region
    _
  $region5: #{rect_model_afr_forward.1} parent=0 // pred_fallthru
    _
  // Predicated region
  $region6: #{rect_model_afr_forward.1} parent=0 // pred_check
    _
  $region7: #{rect_model_afr_forward.1} parent=0 // pred_check_branch
    %11 = sbr.rel (0) target = $region9
  $region8: #{rect_model_afr_forward.1} parent=0 // pred_region
    _
  $region9: #{rect_model_afr_forward.1} parent=0 // pred_fallthru
    _
  // Predicated region
  $region10: #{rect_model_afr_forward.1} parent=0 // pred_check
    _
  $region11: #{rect_model_afr_forward.1} parent=0 // pred_check_branch
    %13 = sbr.rel (0) target = $region13
  $region12: #{rect_model_afr_forward.1} parent=0 // pred_region
    _
  $region13: #{rect_model_afr_forward.1} parent=0 // pred_fallthru
    _
  %v14 = vld [vmem:[%s0] sm:$0xff]
  %v15 = vld [vmem:[%s0 + $0x8] sm:$0xff]
  %v16 = vld [vmem:[%s1] sm:$0xff]
  %v17 = vld [vmem:[%s1 + $0x8] sm:$0xff]
  %v18 = vld [vmem:[%s1 + $0x10] sm:$0xff]
  %v19 = vld [vmem:[%s1 + $0x18] sm:$0xff]
  %v20 = vld [vmem:[%s1 + $0x20] sm:$0xff]
  %v21 = vld [vmem:[%s1 + $0x28] sm:$0xff]
  %v22 = vld [vmem:[%s1 + $0x30] sm:$0xff]
  %v23 = vld [vmem:[%s1 + $0x38] sm:$0xff]
  %v24 = vld [vmem:[%s1 + $0x40] sm:$0xff]
  %v25 = vld [vmem:[%s1 + $0x48] sm:$0xff]
  %v26 = vld [vmem:[%s1 + $0x50] sm:$0xff]
  %v27 = vld [vmem:[%s1 + $0x58] sm:$0xff]
  %v28 = vld [vmem:[%s1 + $0x60] sm:$0xff]
  %v29 = vld [vmem:[%s1 + $0x68] sm:$0xff]
  %v30 = vld [vmem:[%s1 + $0x70] sm:$0xff]
  %v31 = vld [vmem:[%s1 + $0x78] sm:$0xff]
  %v32 = vld [vmem:[%s1 + $0x80] sm:$0xff]
  %v33 = vld [vmem:[%s1 + $0x88] sm:$0xff]
  %v34 = vld [vmem:[%s1 + $0x90] sm:$0xff]
  %v35 = vld [vmem:[%s1 + $0x98] sm:$0xff]
  %v36 = vld [vmem:[%s1 + $0xa0] sm:$0xff]
  %v37 = vld [vmem:[%s1 + $0xa8] sm:$0xff]
  %v38 = vld [vmem:[%s1 + $0xb0] sm:$0xff]
  %v39 = vld [vmem:[%s1 + $0xb8] sm:$0xff]
  %v40 = vld [vmem:[%s1 + $0xc0] sm:$0xff]
  %v41 = vld [vmem:[%s1 + $0xc8] sm:$0xff]
  %v42 = vld [vmem:[%s1 + $0xd0] sm:$0xff]
  %v43 = vld [vmem:[%s1 + $0xd8] sm:$0xff]
  %v44 = vld [vmem:[%s1 + $0xe0] sm:$0xff]
  %v45 = vld [vmem:[%s1 + $0xe8] sm:$0xff]
  %v46 = vld [vmem:[%s1 + $0xf0] sm:$0xff]
  %v47 = vld [vmem:[%s1 + $0xf8] sm:$0xff]
  %v48 = vld [vmem:[%s1 + $0x100] sm:$0xff]
  %v49 = vld [vmem:[%s1 + $0x108] sm:$0xff]
  %v50 = vld [vmem:[%s1 + $0x110] sm:$0xff]
  %v51 = vld [vmem:[%s1 + $0x118] sm:$0xff]
  %v52 = vld [vmem:[%s1 + $0x120] sm:$0xff]
  %v53 = vld [vmem:[%s1 + $0x128] sm:$0xff]
  %v54 = vld [vmem:[%s1 + $0x130] sm:$0xff]
  %v55 = vld [vmem:[%s1 + $0x138] sm:$0xff]
  %v56 = vld [vmem:[%s1 + $0x140] sm:$0xff]
  %v57 = vld [vmem:[%s1 + $0x148] sm:$0xff]
  %v58 = vld [vmem:[%s1 + $0x150] sm:$0xff]
  %v59 = vld [vmem:[%s1 + $0x158] sm:$0xff]
  %v60 = vld [vmem:[%s1 + $0x160] sm:$0xff]
  %v61 = vld [vmem:[%s1 + $0x168] sm:$0xff]
  %v62 = vld [vmem:[%s1 + $0x170] sm:$0xff]
  %v63 = vld [vmem:[%s1 + $0x178] sm:$0xff]
  %v64 = vld [vmem:[%s1 + $0x180] sm:$0xff]
  %v65 = vld [vmem:[%s1 + $0x188] sm:$0xff]
  %v66 = vld [vmem:[%s1 + $0x190] sm:$0xff]
  %v67 = vld [vmem:[%s1 + $0x198] sm:$0xff]
  %v68 = vld [vmem:[%s1 + $0x1a0] sm:$0xff]
  %v69 = vld [vmem:[%s1 + $0x1a8] sm:$0xff]
  %v70 = vld [vmem:[%s1 + $0x1b0] sm:$0xff]
  %v71 = vld [vmem:[%s1 + $0x1b8] sm:$0xff]
  %v72 = vld [vmem:[%s1 + $0x1c0] sm:$0xff]
  %v73 = vld [vmem:[%s1 + $0x1c8] sm:$0xff]
  %v74 = vld [vmem:[%s1 + $0x1d0] sm:$0xff]
  %v75 = vld [vmem:[%s1 + $0x1d8] sm:$0xff]
  %v76 = vld [vmem:[%s1 + $0x1e0] sm:$0xff]
  %v77 = vld [vmem:[%s1 + $0x1e8] sm:$0xff]
  %v78 = vld [vmem:[%s1 + $0x1f0] sm:$0xff]
  %v79 = vld [vmem:[%s1 + $0x1f8] sm:$0xff]
  %v80 = vld [vmem:[%s2] sm:$0x1]
  %v82 = vperm.slane %v80, 0
  %86 = vst [vmem:[#allocation1] ss:$2 sm:$0xff] %v14
  %s87 = scalar_lea.vmem [#allocation1], 16
  %88 = vst [vmem:[%s87] ss:$2 sm:$0xff] %v15
  %v89 = vld.sshfl [vmem:[#allocation1] sm:$0xff pattern:$0x75316420]
  %v90 = vld.sshfl [vmem:[#allocation1 + $0x8] sm:$0xff pattern:$0x75316420]
  %v91 = vld.sshfl [vmem:[#allocation1 + $0x10] sm:$0xff pattern:$0x75316420]
  %v92 = vld.sshfl [vmem:[#allocation1 + $0x18] sm:$0xff pattern:$0x75316420]
  %97 = vmatpush.msra.mxu0 %v31
  %98 = vmatpush.msra.mxu0 %v30
  %99 = vmatpush.msra.mxu0 %v29
  %100 = vmatpush.msra.mxu0 %v28
  %101 = vmatpush.msra.mxu0 %v27
  %102 = vmatpush.msra.mxu0 %v26
  %103 = vmatpush.msra.mxu0 %v25
  %104 = vmatpush.msra.mxu0 %v24
  %105 = vmatpush.msra.mxu0 %v23
  %106 = vmatpush.msra.mxu0 %v22
  %107 = vmatpush.msra.mxu0 %v21
  %108 = vmatpush.msra.mxu0 %v20
  %109 = vmatpush.msra.mxu0 %v19
  %110 = vmatpush.msra.mxu0 %v18
  %111 = vmatpush.msra.mxu0 %v17
  %112 = vmatpush.msra.mxu0 %v16
  %113 = vmatmul.f32.gmra.mxu0 %v89
  %v114 = vpop.f32.mrf.mxu0
  %v115 = vadd.f32 %v82, %v114
  %116 = vdwg.mxu0
  %117 = vmatpush.msra.mxu0 %v47
  %118 = vmatpush.msra.mxu0 %v46
  %119 = vmatpush.msra.mxu0 %v45
  %120 = vmatpush.msra.mxu0 %v44
  %121 = vmatpush.msra.mxu0 %v43
  %122 = vmatpush.msra.mxu0 %v42
  %123 = vmatpush.msra.mxu0 %v41
  %124 = vmatpush.msra.mxu0 %v40
  %125 = vmatpush.msra.mxu0 %v39
  %126 = vmatpush.msra.mxu0 %v38
  %127 = vmatpush.msra.mxu0 %v37
  %128 = vmatpush.msra.mxu0 %v36
  %129 = vmatpush.msra.mxu0 %v35
  %130 = vmatpush.msra.mxu0 %v34
  %131 = vmatpush.msra.mxu0 %v33
  %132 = vmatpush.msra.mxu0 %v32
  %133 = vmatmul.f32.gmra.mxu0 %v90
  %v134 = vpop.f32.mrf.mxu0
  %v135 = vadd.f32 %v115, %v134
  %136 = vdwg.mxu0
  %137 = vmatpush.msra.mxu0 %v63
  %138 = vmatpush.msra.mxu0 %v62
  %139 = vmatpush.msra.mxu0 %v61
  %140 = vmatpush.msra.mxu0 %v60
  %141 = vmatpush.msra.mxu0 %v59
  %142 = vmatpush.msra.mxu0 %v58
  %143 = vmatpush.msra.mxu0 %v57
  %144 = vmatpush.msra.mxu0 %v56
  %145 = vmatpush.msra.mxu0 %v55
  %146 = vmatpush.msra.mxu0 %v54
  %147 = vmatpush.msra.mxu0 %v53
  %148 = vmatpush.msra.mxu0 %v52
  %149 = vmatpush.msra.mxu0 %v51
  %150 = vmatpush.msra.mxu0 %v50
  %151 = vmatpush.msra.mxu0 %v49
  %152 = vmatpush.msra.mxu0 %v48
  %153 = vmatmul.f32.gmra.mxu0 %v91
  %v154 = vpop.f32.mrf.mxu0
  %v155 = vadd.f32 %v135, %v154
  %156 = vdwg.mxu0
  %157 = vmatpush.msra.mxu0 %v79
  %158 = vmatpush.msra.mxu0 %v78
  %159 = vmatpush.msra.mxu0 %v77
  %160 = vmatpush.msra.mxu0 %v76
  %161 = vmatpush.msra.mxu0 %v75
  %162 = vmatpush.msra.mxu0 %v74
  %163 = vmatpush.msra.mxu0 %v73
  %164 = vmatpush.msra.mxu0 %v72
  %165 = vmatpush.msra.mxu0 %v71
  %166 = vmatpush.msra.mxu0 %v70
  %167 = vmatpush.msra.mxu0 %v69
  %168 = vmatpush.msra.mxu0 %v68
  %169 = vmatpush.msra.mxu0 %v67
  %170 = vmatpush.msra.mxu0 %v66
  %171 = vmatpush.msra.mxu0 %v65
  %172 = vmatpush.msra.mxu0 %v64
  %173 = vmatmul.f32.gmra.mxu0 %v92
  %v174 = vpop.f32.mrf.mxu0
  %v175 = vadd.f32 %v155, %v174
  %176 = vdwg.mxu0
  %177 = vst [vmem:[%s3] sm:$0xf] %v175
  // Predicated region
  $region14: #{rect_model_afr_forward.1} parent=0 // pred_check
    _
  $region15: #{rect_model_afr_forward.1} parent=0 // pred_check_branch
    %179 = sbr.rel (0) target = $region17
  $region16: #{rect_model_afr_forward.1} parent=0 // pred_region
    _
  $region17: #{rect_model_afr_forward.1} parent=0 // pred_fallthru
    _
  // Predicated region
  $region18: #{rect_model_afr_forward.1} parent=0 // pred_check
    _
  $region19: #{rect_model_afr_forward.1} parent=0 // pred_check_branch
    %181 = sbr.rel (0) target = $region21
  $region20: #{rect_model_afr_forward.1} parent=0 // pred_region
    _
  $region21: #{rect_model_afr_forward.1} parent=0 // pred_fallthru
    _

</llo_original>
